<compile_context>
chip_gen: v7x
topology: tpu7x:2x2x1
jax: 0.10.0
libtpu: 0.0.40
codegen_flags: <defaults>
</compile_context>

<pallas_src>
import functools

import jax
import jax.numpy as jnp
from jax.experimental import pallas as pl
from jax.experimental.pallas import tpu as pltpu


def _layernorm_kernel(x_ref, alpha_ref, bias_ref, o_ref, *, eps):
    # One tile of rows, full feature axis resident in VMEM. Compute in f32.
    x = x_ref[...].astype(jnp.float32)
    n = x.shape[-1]
    # Two-pass mean/var for numerical robustness. Unbiased (N-1) estimator and
    # eps added OUTSIDE sqrt to match torch.Tensor.std() / the reference module.
    mean = jnp.mean(x, axis=-1, keepdims=True)
    diff = x - mean
    denom = 1.0 / max(n - 1, 1)
    var = jnp.sum(diff * diff, axis=-1, keepdims=True) * denom
    std = jnp.sqrt(var)
    # Per-row reciprocal (shape (tile, 1)) instead of a (tile, features) divide.
    inv = pl.reciprocal(std + eps, approx=False)
    alpha = alpha_ref[...].astype(jnp.float32)
    bias = bias_ref[...].astype(jnp.float32)
    y = diff * inv * alpha + bias
    o_ref[...] = y.astype(o_ref.dtype)


def _round_up(v, m):
    return ((v + m - 1) // m) * m


def _pick_row_tile(rows, features, itemsize, requested):
    # Sublane packing: 8 rows/vreg for 4-byte dtypes, 16 for bf16, 32 for int8/fp8.
    sublane = {4: 8, 2: 16, 1: 32}.get(itemsize, 8)
    if requested is None:
        # Budget: double-buffered in + double-buffered out + f32 temps, kept under
        # ~24 MiB so it fits every generation's VMEM with headroom.
        budget_bytes = 24 * 1024 * 1024
        per_row_bytes = features * (2 * 2 * itemsize + 4 * 4)
        requested = min(1024, max(sublane, budget_bytes // max(per_row_bytes, 1)))
    tile = max(sublane, (requested // sublane) * sublane)
    # Never use a tile larger than the (sublane-rounded) row count.
    tile = min(tile, _round_up(rows, sublane))
    return tile


def layer_normalization(x, alpha, bias, *, eps=1e-6, row_tile=None):
    """LayerNormalization forward. x: (..., features); alpha, bias: (features,)."""
    orig_shape = x.shape
    features = orig_shape[-1]
    rows = 1
    for d in orig_shape[:-1]:
        rows *= d
    x2d = x.reshape(rows, features)
    alpha2d = alpha.reshape(1, features)
    bias2d = bias.reshape(1, features)

    itemsize = jnp.dtype(x.dtype).itemsize
    tile = _pick_row_tile(rows, features, itemsize, row_tile)

    # Ragged row counts: pad (padded rows are zeros -> finite output, sliced off).
    rows_padded = pl.cdiv(rows, tile) * tile
    if rows_padded != rows:
        x2d = jnp.pad(x2d, ((0, rows_padded - rows), (0, 0)))

    grid = (rows_padded // tile,)

    out2d = pl.pallas_call(
        functools.partial(_layernorm_kernel, eps=eps),
        out_shape=jax.ShapeDtypeStruct((rows_padded, features), x.dtype),
        grid_spec=pltpu.PrefetchScalarGridSpec(
            num_scalar_prefetch=0,
            grid=grid,
            in_specs=[
                pl.BlockSpec((tile, features), lambda i: (i, 0)),
                pl.BlockSpec((1, features), lambda i: (0, 0)),
                pl.BlockSpec((1, features), lambda i: (0, 0)),
            ],
            out_specs=pl.BlockSpec((tile, features), lambda i: (i, 0)),
        ),
        compiler_params=pltpu.CompilerParams(
            dimension_semantics=("parallel",),  # shards the row grid on v7x's 2 TCs
            vmem_limit_bytes=48 * 1024 * 1024,
        ),
    )(x2d, alpha2d, bias2d)

    if rows_padded != rows:
        out2d = out2d[:rows]
    return out2d.reshape(orig_shape)


def _reference(x, alpha, bias, eps):
    mean = jnp.mean(x, axis=-1, keepdims=True)
    std = jnp.std(x, axis=-1, keepdims=True, ddof=1)
    return alpha * (x - mean) / (std + eps) + bias


if __name__ == "__main__":
    key = jax.random.PRNGKey(0)
    eps = 1e-6

    # Primary demo: lane-dense feature dim (multiple of 128) for full-width stores.
    batch, seq, hidden = 2, 8, 128
    alpha = jnp.ones((hidden,), dtype=jnp.float32)   # nn.Parameter(torch.ones(features))
    bias = jnp.zeros((hidden,), dtype=jnp.float32)   # nn.Parameter(torch.zeros(features))
    k1, k2 = jax.random.split(key)
    x = jax.random.normal(k1, (batch, seq, hidden), dtype=jnp.float32)

    out = layer_normalization(x, alpha, bias, eps=eps)
    out = jax.block_until_ready(out)
    ref = _reference(x, alpha, bias, eps)
    assert out.shape == x.shape
    assert jnp.allclose(out, ref, atol=1e-5, rtol=1e-5), "mismatch vs reference (dense case)"

    # Secondary check: ragged row count + small (non-128) feature dim exercises
    # the padding path and the general-features fallback.
    b2, s2, h2 = 3, 5, 32
    alpha2 = jnp.ones((h2,), dtype=jnp.float32)
    bias2 = jnp.zeros((h2,), dtype=jnp.float32)
    x2 = jax.random.normal(k2, (b2, s2, h2), dtype=jnp.float32)
    out2 = jax.block_until_ready(layer_normalization(x2, alpha2, bias2, eps=eps))
    ref2 = _reference(x2, alpha2, bias2, eps)
    assert out2.shape == x2.shape
    assert jnp.allclose(out2, ref2, atol=1e-5, rtol=1e-5), "mismatch vs reference (ragged case)"

    print("KERNEL_OK")
</pallas_src>

<mosaic_0001>
module attributes {stable_mosaic.version = 11 : i64} {
  func.func @_layernorm_kernel(%arg0: i32, %arg1: memref<16x128xf32, #tpu.memory_space<vmem>>, %arg2: memref<1x128xf32, #tpu.memory_space<vmem>>, %arg3: memref<1x128xf32, #tpu.memory_space<vmem>>, %arg4: memref<16x128xf32, #tpu.memory_space<vmem>>) attributes {dimension_semantics = [#tpu.dimension_semantics<parallel>], iteration_bounds = array<i64: 1>, scalar_prefetch = 0 : i64, scratch_operands = 0 : i64, tpu.core_type = #tpu.core_type<tc>, window_params = [{transform_indices = @transform_0, window_bounds = array<i64: 16, 128>}, {pipeline_mode = #tpu.pipeline_mode<synchronous>, transform_indices = @transform_1, window_bounds = array<i64: 1, 128>}, {pipeline_mode = #tpu.pipeline_mode<synchronous>, transform_indices = @transform_2, window_bounds = array<i64: 1, 128>}, {transform_indices = @transform_3, window_bounds = array<i64: 16, 128>}]} {
    %c0 = arith.constant 0 : index
    %c0_0 = arith.constant 0 : index
    %0 = vector.load %arg1[%c0, %c0_0] : memref<16x128xf32, #tpu.memory_space<vmem>>, vector<16x128xf32>
    %cst = arith.constant dense<0.000000e+00> : vector<16xf32>
    %1 = vector.multi_reduction <add>, %0, %cst [1] : vector<16x128xf32> to vector<16xf32>
    %2 = vector.shape_cast %1 : vector<16xf32> to vector<16x1xf32>
    %cst_1 = arith.constant 1.280000e+02 : f32
    %3 = vector.broadcast %cst_1 : f32 to vector<16x1xf32>
    %4 = arith.divf %2, %3 : vector<16x1xf32>
    %5 = vector.broadcast %4 : vector<16x1xf32> to vector<16x128xf32>
    %6 = arith.subf %0, %5 : vector<16x128xf32>
    %7 = arith.mulf %6, %6 : vector<16x128xf32>
    %cst_2 = arith.constant dense<0.000000e+00> : vector<16xf32>
    %8 = vector.multi_reduction <add>, %7, %cst_2 [1] : vector<16x128xf32> to vector<16xf32>
    %9 = vector.shape_cast %8 : vector<16xf32> to vector<16x1xf32>
    %cst_3 = arith.constant 0.00787401571 : f32
    %10 = vector.broadcast %cst_3 : f32 to vector<16x1xf32>
    %11 = arith.mulf %9, %10 : vector<16x1xf32>
    %12 = math.sqrt %11 : vector<16x1xf32>
    %cst_4 = arith.constant 9.99999997E-7 : f32
    %13 = vector.broadcast %cst_4 : f32 to vector<16x1xf32>
    %14 = arith.addf %12, %13 : vector<16x1xf32>
    %15 = tpu.reciprocal %14 : vector<16x1xf32> -> vector<16x1xf32>
    %c0_5 = arith.constant 0 : index
    %c0_6 = arith.constant 0 : index
    %16 = vector.load %arg2[%c0_5, %c0_6] : memref<1x128xf32, #tpu.memory_space<vmem>>, vector<1x128xf32>
    %c0_7 = arith.constant 0 : index
    %c0_8 = arith.constant 0 : index
    %17 = vector.load %arg3[%c0_7, %c0_8] : memref<1x128xf32, #tpu.memory_space<vmem>>, vector<1x128xf32>
    %18 = vector.broadcast %15 : vector<16x1xf32> to vector<16x128xf32>
    %19 = arith.mulf %6, %18 : vector<16x128xf32>
    %20 = vector.broadcast %16 : vector<1x128xf32> to vector<16x128xf32>
    %21 = arith.mulf %19, %20 : vector<16x128xf32>
    %22 = vector.broadcast %17 : vector<1x128xf32> to vector<16x128xf32>
    %23 = arith.addf %21, %22 : vector<16x128xf32>
    %c0_9 = arith.constant 0 : index
    %c0_10 = arith.constant 0 : index
    %24 = vector.load %arg4[%c0_9, %c0_10] : memref<16x128xf32, #tpu.memory_space<vmem>>, vector<16x128xf32>
    tpu.vector_store %arg4[%c0_9, %c0_10], %23 {strides = array<i32>} : memref<16x128xf32, #tpu.memory_space<vmem>>, vector<16x128xf32>,
    return
  }
  func.func @transform_0(%arg0: i32) -> (i32, i32) {
    %c0_i32 = arith.constant 0 : i32
    %c0_i32_0 = arith.constant 0 : i32
    return %arg0, %c0_i32 : i32, i32
  }
  func.func @transform_1(%arg0: i32) -> (i32, i32) {
    %c0_i32 = arith.constant 0 : i32
    %c0_i32_0 = arith.constant 0 : i32
    %c0_i32_1 = arith.constant 0 : i32
    return %c0_i32, %c0_i32_0 : i32, i32
  }
  func.func @transform_2(%arg0: i32) -> (i32, i32) {
    %c0_i32 = arith.constant 0 : i32
    %c0_i32_0 = arith.constant 0 : i32
    %c0_i32_1 = arith.constant 0 : i32
    return %c0_i32, %c0_i32_0 : i32, i32
  }
  func.func @transform_3(%arg0: i32) -> (i32, i32) {
    %c0_i32 = arith.constant 0 : i32
    %c0_i32_0 = arith.constant 0 : i32
    return %arg0, %c0_i32 : i32, i32
  }
}

</mosaic_0001>

<llo_original>
// kernel: tpu_custom_call.1
$region0: #{tpu_custom_call.1}
  #allocation0 [shape = 'u32[]', space=smem, size = 0x4, offset = 0x4, fixed_abs, tag = 'smem constant byte address 0x4 - core index']
  #allocation1 [shape = 'u32[144,128]{1,0:T(1,128)}', space=vmem, size = 0x12000, scoped, tag = 'internal scratch']
  %s0 = inlined_call_operand.hbm [shape: f32[16,128], index: 0, kind: input, shape index: {}]
  %s1 = inlined_call_operand.vmem [shape: f32[1,128], index: 1, kind: input, shape index: {}]
  %s2 = inlined_call_operand.vmem [shape: f32[1,128], index: 2, kind: input, shape index: {}]
  %s3 = inlined_call_operand.hbm [shape: f32[16,128], index: 3, kind: output, shape index: {}]
  %s4 = sld [smem:[#allocation0]]
  $region26: #{tpu_custom_call.1} parent=0
    _
  %s6 = ssub.s32 1, %s4
  %s7 = scalar_select 0, %s6, %s4
  $region1: #{tpu_custom_call.1} parent=0
    #allocation2 [shape = 'u8[8192]{0}', space=vmem, size = 0x2000, scoped, tag = 'input window, operand 0, single buffered']
    #allocation3 [shape = 's32[1]{0}', space=sflag, size = 0x4, scoped, tag = 'scoped memory for tpu_custom_call.1']
    #allocation4 [shape = 's32[1]{0}', space=sflag, size = 0x4, scoped, tag = 'scoped memory for tpu_custom_call.1']
    #allocation5 [shape = 'u8[8192]{0}', space=vmem, size = 0x2000, scoped, tag = 'output window, operand 0, single buffered']
    %8 = vsyncpa [#allocation3], 0
    %9 = vsyncpa [#allocation4], 0
    // Predicated region
    $region2: #{tpu_custom_call.1} parent=1 // pred_check
      _
    $region3: #{tpu_custom_call.1} parent=1 // pred_check_branch
      %11 = sbr.rel (0) target = $region5
    $region4: #{tpu_custom_call.1} parent=1 // pred_region
      %s13 = ssub.s32 256, 256
      %14 = vsyncadd [#allocation3], %s13
      %s15 = sshll.u32 [#allocation2], 4
      %s16 = int_to_ptr.vmem [resolvable:$true] %s15
      %21 = dma.hbm_to_vmem [thread:$0]  %s0, 256, %s16, [#allocation3], 128, 128, 8
    $region5: #{tpu_custom_call.1} parent=1 // pred_fallthru
      _
    // Predicated region
    $region6: #{tpu_custom_call.1} parent=1 // pred_check
      _
    $region7: #{tpu_custom_call.1} parent=1 // pred_check_branch
      %23 = sbr.rel (0) target = $region9
    $region8: #{tpu_custom_call.1} parent=1 // pred_region
      _
    $region9: #{tpu_custom_call.1} parent=1 // pred_fallthru
      _
    // Predicated region
    $region10: #{tpu_custom_call.1} parent=1 // pred_check
      _
    $region11: #{tpu_custom_call.1} parent=1 // pred_check_branch
      %25 = sbr.rel (0) target = $region13
    $region12: #{tpu_custom_call.1} parent=1 // pred_region
      _
    $region13: #{tpu_custom_call.1} parent=1 // pred_fallthru
      _
    // Predicated region
    $region14: #{tpu_custom_call.1} parent=1 // pred_check
      _
    $region15: #{tpu_custom_call.1} parent=1 // pred_check_branch
      %27 = sbr.rel (0) target = $region17
    $region16: #{tpu_custom_call.1} parent=1 // pred_region
      %28 = dma.done [#allocation3], 256
    $region17: #{tpu_custom_call.1} parent=1 // pred_fallthru
      _
    %v29 = vld [vmem:[#allocation2] sm:$0xff]
    %v30 = vld [vmem:[#allocation2 + $0x8] sm:$0xff]
    %31 = vadd.xlane.f32.xlu0 %v29
    %v32 = vpop.xlane.xlu0 %31
    %33 = vadd.xlane.f32.xlu0 %v30
    %v34 = vpop.xlane.xlu0 %33
    %v35 = vrcp.pop 128.0
    %v36 = vmul.f32 %v32, %v35
    %v37 = vmul.f32 %v34, %v35
    %v38 = vsub.f32 %v29, %v36
    %v39 = vsub.f32 %v30, %v37
    %v40 = vmul.f32 %v38, %v38
    %v41 = vmul.f32 %v39, %v39
    %42 = vadd.xlane.f32.xlu0 %v40
    %v43 = vpop.xlane.xlu0 %42
    %44 = vadd.xlane.f32.xlu0 %v41
    %v45 = vpop.xlane.xlu0 %44
    %v46 = vmul.f32 %v43, 0.007874016
    %v47 = vmul.f32 %v45, 0.007874016
    %v48 = vrsqrt.pop %v46
    %v49 = vmul.f32 %v46, %v48
    %vm50 = vcmp.eq.f32.partialorder %v46, inf
    %v51 = vsel %vm50, %v46, %v49
    %vm52 = vcmp.eq.f32.partialorder %v46, 0.0
    %v53 = vand.u32 %v46, 2147483648
    %v54 = vsel %vm52, %v53, %v51
    %v55 = vrsqrt.pop %v47
    %v56 = vmul.f32 %v47, %v55
    %vm57 = vcmp.eq.f32.partialorder %v47, inf
    %v58 = vsel %vm57, %v47, %v56
    %vm59 = vcmp.eq.f32.partialorder %v47, 0.0
    %v60 = vand.u32 %v47, 2147483648
    %v61 = vsel %vm59, %v60, %v58
    %v62 = vadd.f32 %v54, 1e-06
    %v63 = vadd.f32 %v61, 1e-06
    %v64 = vrcp.pop %v62
    %v65 = vrcp.pop %v63
    %v66 = vld [vmem:[%s1] sm:$0x1]
    %v67 = vld [vmem:[%s2] sm:$0x1]
    %v68 = vmul.f32 %v38, %v64
    %v69 = vmul.f32 %v39, %v65
    %v71 = vlaneseq
    %v72 = vshrl.u32 %v71, 7
    %v73 = vsub.s32 0, %v72
    %v74 = vrot.slane %v66, %v73
    %v76 = vmul.f32 %v68, %v74
    %v77 = vmul.f32 %v69, %v74
    %v79 = vlaneseq
    %v80 = vshrl.u32 %v79, 7
    %v81 = vsub.s32 0, %v80
    %v82 = vrot.slane %v67, %v81
    %v84 = vadd.f32 %v76, %v82
    %v85 = vadd.f32 %v77, %v82
    %86 = vst [vmem:[#allocation5] sm:$0xff] %v84
    %87 = vst [vmem:[#allocation5 + $0x8] sm:$0xff] %v85
    // Predicated region
    $region18: #{tpu_custom_call.1} parent=1 // pred_check
      _
    $region19: #{tpu_custom_call.1} parent=1 // pred_check_branch
      %89 = sbr.rel (0) target = $region21
    $region20: #{tpu_custom_call.1} parent=1 // pred_region
      %s91 = ssub.s32 256, 256
      %92 = vsyncadd [#allocation4], %s91
      %s93 = sshll.u32 [#allocation5], 4
      %s94 = int_to_ptr.vmem [resolvable:$true] %s93
      %99 = dma.vmem_to_hbm [thread:$0]  %s94, 256, %s3, [#allocation4], 128, 128, 8
    $region21: #{tpu_custom_call.1} parent=1 // pred_fallthru
      _
    // Predicated region
    $region22: #{tpu_custom_call.1} parent=1 // pred_check
      _
    $region23: #{tpu_custom_call.1} parent=1 // pred_check_branch
      %101 = sbr.rel (0) target = $region25
    $region24: #{tpu_custom_call.1} parent=1 // pred_region
      %102 = dma.done [#allocation4], 256
    $region25: #{tpu_custom_call.1} parent=1 // pred_fallthru
      _
    %103 = vsyncpa [#allocation3], 1
    %104 = vsyncpa [#allocation4], 1

</llo_original>
